<compile_context>
chip_gen: v6e
topology: v6e:2x2x1
jax: 0.10.0
libtpu: 0.0.40
codegen_flags: <defaults>
</compile_context>

<pallas_src>
import itertools
import numpy as np
import jax
import jax.numpy as jnp
from jax.experimental import pallas as pl
from jax.experimental.pallas import tpu as pltpu

# ---- problem sizes (small, consistent with the module) ----------------------
B, M, G, K = 2, 8, 4, 32          # images, pairs/image, GT pairs/image, classes
BM, BG = B * M, B * G
SLAB_ROWS = 4 * BM + 4
N_BOXES = 10
EPS = 1e-6
ALPHA, GAMMA = 0.5, 2.0
COST_OBJECT = COST_VERB = COST_BBOX = COST_GIOU = 1.0


# =============================================================================
# Kernel 1: HungarianMatcher cost matrix, whole batch in one invocation.
# =============================================================================
def _l1_cdist(a, bt):
    """a: (N,4), bt: (4,P) -> pairwise L1 distance (N,P)."""
    acc = jnp.abs(a[:, 0:1] - bt[0:1, :])
    for k in range(1, 4):
        acc = acc + jnp.abs(a[:, k:k + 1] - bt[k:k + 1, :])
    return acc


def _giou_mg(a, bt):
    """a: (N,4) cxcywh, bt: (4,P) cxcywh transposed -> pairwise GIoU (N,P)."""
    ax1 = a[:, 0:1] - 0.5 * a[:, 2:3]
    ay1 = a[:, 1:2] - 0.5 * a[:, 3:4]
    ax2 = a[:, 0:1] + 0.5 * a[:, 2:3]
    ay2 = a[:, 1:2] + 0.5 * a[:, 3:4]
    bx1 = bt[0:1, :] - 0.5 * bt[2:3, :]
    by1 = bt[1:2, :] - 0.5 * bt[3:4, :]
    bx2 = bt[0:1, :] + 0.5 * bt[2:3, :]
    by2 = bt[1:2, :] + 0.5 * bt[3:4, :]
    area_a = (ax2 - ax1) * (ay2 - ay1)                       # (N,1)
    area_b = (bx2 - bx1) * (by2 - by1)                       # (1,P)
    iw = jnp.maximum(jnp.minimum(ax2, bx2) - jnp.maximum(ax1, bx1), 0.0)
    ih = jnp.maximum(jnp.minimum(ay2, by2) - jnp.maximum(ay1, by1), 0.0)
    inter = iw * ih
    union = area_a + area_b - inter
    # tiny eps guards degenerate (zero-area) boxes from producing Inf/NaN;
    # boxes here are >=0.1 wide so the value change is ~1e-7 relative.
    iou = inter / (union + 1e-9)
    cw = jnp.maximum(ax2, bx2) - jnp.minimum(ax1, bx1)
    ch = jnp.maximum(ay2, by2) - jnp.minimum(ay1, by1)
    area_c = cw * ch
    return iou - (area_c - union) / (area_c + 1e-9)


def cost_matrix_kernel(slab_ref, glDt_ref, c_ref):
    slab = slab_ref[...]                                    # (SLAB_ROWS, K)

    pr_h = slab[0:BM, :]                                    # (BM, K)
    pr_o = slab[BM:2 * BM, :]                               # (BM, K)
    lg = slab[2 * BM:3 * BM, :]                             # (BM, K)
    scores = jax.nn.sigmoid(lg) * (pr_h * pr_o)             # (BM, K)

    # --- verb classification cost ----------------------------------------
    # Original per-image math:
    #   cost_verb = -0.5*( s@l.T/(lsum+eps) + (1-s)@(1-l).T/(nlsum+eps) )
    # Algebraic refactor (all GT-only terms host-precomputed):
    #   glD  = l/(lsum+eps) - (1-l)/(nlsum+eps)      (BG, K)   -> glDt = glD.T
    #   vsum = nlsum/(nlsum+eps)                     (BG,)     (folded into
    #   cost_verb = -0.5*( scores @ glD.T + vsum )              cost_const below)
    # -> a single bf16 MXU matmul for the whole batch.
    pos = jnp.dot(scores.astype(jnp.bfloat16), glDt_ref[...],
                  preferred_element_type=jnp.float32)       # (BM, BG)

    # --- box L1 cost (cdist p=1) and GIoU cost ----------------------------
    packed = slab[3 * BM:4 * BM, :]                         # (BM, K)
    bh = packed[:, 0:4]                                     # (BM, 4)
    bo = packed[:, 4:8]                                     # (BM, 4)
    cost_const = packed[:, 8:8 + BG]                        # (BM, BG)
    gt = slab[4 * BM:4 * BM + 4, :]                         # (4, K)
    gh_t = gt[:, 0:BG]                                      # (4, BG)
    go_t = gt[:, BG:2 * BG]                                 # (4, BG)

    cost_bbox = jnp.maximum(_l1_cdist(bh, gh_t), _l1_cdist(bo, go_t))
    cost_giou = jnp.maximum(-_giou_mg(bh, gh_t), -_giou_mg(bo, go_t))

    # cost_const already holds COST_OBJECT*cost_object + COST_VERB*(-0.5*vsum)
    c_ref[...] = ((-0.5 * COST_VERB) * pos + COST_BBOX * cost_bbox +
                  COST_GIOU * cost_giou + cost_const)


_CM_COST = pl.CostEstimate(
    flops=2 * BM * K * BG + 80 * BM * BG,
    transcendentals=BM * K,
    bytes_accessed=SLAB_ROWS * K * 4 + K * BG * 2 + BM * BG * 4)


def _cost_matrix_impl(slab, glDt):
    """Single ungridded invocation: full-batch cost matrix (BM, BG)."""
    return pl.pallas_call(
        cost_matrix_kernel,
        out_shape=jax.ShapeDtypeStruct((BM, BG), jnp.float32),
        in_specs=[pl.BlockSpec(memory_space=pltpu.MemorySpace.VMEM)] * 2,
        out_specs=pl.BlockSpec(memory_space=pltpu.MemorySpace.VMEM),
        cost_estimate=_CM_COST,
    )(slab, glDt)


# jit-cache the compiled executable; no per-forward re-trace of pallas_call.
_cost_matrix = jax.jit(_cost_matrix_impl)


# =============================================================================
# Kernel 2: masked binary focal loss, fully reduced to one SMEM scalar.
#           Reuses the same slab as kernel 1 (priors / logits rows).
# =============================================================================
def focal_loss_kernel(slab_ref, labels_ref, out_ref):
    slab = slab_ref[...]
    pr_h = slab[0:BM, :]
    pr_o = slab[BM:2 * BM, :]
    lg = slab[2 * BM:3 * BM, :]
    y = labels_ref[...]              # (BM, K)

    p = pr_h * pr_o                  # == torch.cat(prior,1).prod(0)

    # Let a = p + 1e-8, b = 1 + exp(-lg) - p  (> 0 since p in (0,1)).
    # The module uses x = log(a/b), sigmoid(x) = a/(a+b) and BCE-with-logits(x,y).
    # BCE(x,y) = log(1+exp(x)) - x*y = log(a+b) - log(b) - y*(log(a)-log(b)),
    # so the whole element-wise path needs only 1 exp + 3 logs + 1 divide.
    # Stability: clamp lg from below so exp(-lg) stays finite in f32 (the
    # clamp is a no-op for any realistic logit and avoids inf - inf = NaN).
    lg_c = jnp.maximum(lg, -60.0)
    a = p + 1e-8
    b = 1.0 + jnp.exp(-lg_c) - p
    la = jnp.log(a)
    lb = jnp.log(b)
    lab = jnp.log(a + b)
    x = la - lb                      # == log((p+1e-8)/(1+exp(-lg)-p))
    sig = a / (a + b)                # == sigmoid(x)
    bce = lab - y * x - lb           # == BCE-with-logits(x, y), reduction='none'
    t = jnp.abs(y - sig) + EPS       # GAMMA == 2 -> explicit square (no pow/EUP)
    loss = jnp.abs(1.0 - y - ALPHA) * (t * t) * bce

    # emulates the torch.nonzero(prior) gather (priors here are strictly > 0)
    mask = p > 0.0
    loss_sum = jnp.sum(jnp.where(mask, loss, 0.0))
    n_pos = jnp.sum(jnp.where(jnp.logical_and(mask, y != 0.0), 1.0, 0.0))
    # final normalisation folded in-kernel (module: loss / n_p)
    out_ref[0, 0] = loss_sum / n_pos


_FL_COST = pl.CostEstimate(
    flops=25 * BM * K,
    transcendentals=4 * BM * K,
    bytes_accessed=SLAB_ROWS * K * 4 + BM * K * 4 + 4)


def _focal_loss_impl(slab, labels):
    out = pl.pallas_call(
        focal_loss_kernel,
        out_shape=jax.ShapeDtypeStruct((1, 1), jnp.float32),
        in_specs=[pl.BlockSpec(memory_space=pltpu.MemorySpace.VMEM)] * 2,
        out_specs=pl.BlockSpec(memory_space=pltpu.MemorySpace.SMEM),
        cost_estimate=_FL_COST,
    )(slab, labels)
    return out[0, 0]


_focal_loss = jax.jit(_focal_loss_impl)


# =============================================================================
# Host-side glue (gathers, Hungarian assignment, label scatter)
# =============================================================================
def cxcywh_to_xyxy_np(b):
    cx, cy, w, h = b[:, 0], b[:, 1], b[:, 2], b[:, 3]
    return np.stack([cx - 0.5 * w, cy - 0.5 * h, cx + 0.5 * w, cy + 0.5 * h], 1)


def pairwise_iou_np(a, b):
    """Elementwise IoU of corresponding rows (xyxy)."""
    lt = np.maximum(a[:, :2], b[:, :2])
    rb = np.minimum(a[:, 2:], b[:, 2:])
    wh = np.clip(rb - lt, 0.0, None)
    inter = wh[:, 0] * wh[:, 1]
    area_a = (a[:, 2] - a[:, 0]) * (a[:, 3] - a[:, 1])
    area_b = (b[:, 2] - b[:, 0]) * (b[:, 3] - b[:, 1])
    return inter / (area_a + area_b - inter)


def hungarian(C):
    """Exact linear_sum_assignment by brute force (M, G small)."""
    # TODO(synk): Hungarian assignment is a sequential CPU algorithm; kept host-side.
    m, g = C.shape
    best_cost, best_rows = None, None
    for rows in itertools.permutations(range(m), g):
        c = sum(C[r, j] for j, r in enumerate(rows))
        if best_cost is None or c < best_cost:
            best_cost, best_rows = c, rows
    pairs = sorted(zip(best_rows, range(g)))
    return (np.array([p[0] for p in pairs], dtype=np.int64),
            np.array([p[1] for p in pairs], dtype=np.int64))


def set_criterion_forward(boxes, bh, bo, objects, prior, logits, bbox_deltas,
                          targets):
    """JAX/Pallas equivalent of SetCriterion.forward -> {'focal_loss': scalar}."""
    del bbox_deltas  # not used by SetCriterion.forward (only focal_loss returned)
    bx_h = [boxes[i][bh[i]] for i in range(B)]
    bx_o = [boxes[i][bo[i]] for i in range(B)]

    # ---- host-side packing (all tiny numpy) ----
    prior_cat = np.concatenate(list(prior), axis=1).astype(np.float32)       # (2,BM,K)
    logits_np = np.asarray(logits, np.float32)                               # (BM,K)

    gl = np.concatenate([t['labels'] for t in targets], 0).astype(np.float32)  # (BG,K)
    lsum = gl.sum(1)
    nlsum = (1.0 - gl).sum(1)
    glD = gl / (lsum + EPS)[:, None] - (1.0 - gl) / (nlsum + EPS)[:, None]     # (BG,K)
    vsum = nlsum / (nlsum + EPS)                                               # (BG,)

    det_h = np.concatenate(bx_h, 0).astype(np.float32)                         # (BM,4)
    det_o = np.concatenate(bx_o, 0).astype(np.float32)                         # (BM,4)
    gt_h = np.concatenate([t['boxes_h'] for t in targets], 0).astype(np.float32)
    gt_o = np.concatenate([t['boxes_o'] for t in targets], 0).astype(np.float32)

    # object-class cost precomputed host-side (eq compare + prior-h max are numpy)
    obj_all = np.concatenate(list(objects), 0)                                 # (BM,)
    gobj_all = np.concatenate([t['object'] for t in targets], 0)               # (BG,)
    eq = (obj_all[:, None] == gobj_all[None, :]).astype(np.float32)            # (BM,BG)
    p0max = prior_cat[0].max(axis=1, keepdims=True)                            # (BM,1)
    cost_object = -np.log(eq * p0max + EPS)                                    # (BM,BG)
    # absorb object cost AND the GT-only verb-cost constant into one additive term
    cost_const = (COST_OBJECT * cost_object -
                  0.5 * COST_VERB * vsum[None, :]).astype(np.float32)          # (BM,BG)

    # single packed f32 slab, lane axis = K, shared by both kernels
    slab = np.zeros((SLAB_ROWS, K), np.float32)
    slab[0:BM] = prior_cat[0]
    slab[BM:2 * BM] = prior_cat[1]
    slab[2 * BM:3 * BM] = logits_np
    slab[3 * BM:4 * BM, 0:4] = det_h
    slab[3 * BM:4 * BM, 4:8] = det_o
    slab[3 * BM:4 * BM, 8:8 + BG] = cost_const
    slab[4 * BM:4 * BM + 4, 0:BG] = gt_h.T
    slab[4 * BM:4 * BM + 4, BG:2 * BG] = gt_o.T

    slab_d = jnp.asarray(slab)                         # one H2D transfer, reused twice
    glDt_d = jnp.asarray(glD.T, jnp.bfloat16)          # (K,BG) bf16 MXU RHS

    # ---- device: single cost-matrix kernel for the whole batch (async dispatch) ----
    C = _cost_matrix(slab_d, glDt_d)

    C_np = np.asarray(jax.device_get(C))
    indices = [hungarian(C_np[i * M:(i + 1) * M, i * G:(i + 1) * G])
               for i in range(B)]

    # ---- focal-loss label construction (data-dependent gathers/scatter; host glue) ----
    collated = []
    for i in range(B):
        idx_h, idx_o = indices[i]
        iou_h = pairwise_iou_np(cxcywh_to_xyxy_np(bx_h[i][idx_h]),
                                cxcywh_to_xyxy_np(targets[i]['boxes_h'][idx_o]))
        iou_o = pairwise_iou_np(cxcywh_to_xyxy_np(bx_o[i][idx_h]),
                                cxcywh_to_xyxy_np(targets[i]['boxes_o'][idx_o]))
        mask = (np.minimum(iou_h, iou_o) > 0.5)[:, None].astype(np.float32)
        labels = np.zeros((M, K), np.float32)
        labels[idx_h] = targets[i]['labels'][idx_o] * mask
        collated.append(labels)
    labels_all = jnp.asarray(np.concatenate(collated, 0), jnp.float32)         # (BM,K)

    # second kernel reuses slab_d (priors/logits) and normalises in-kernel
    return {'focal_loss': _focal_loss(slab_d, labels_all)}


# =============================================================================
# Pure numpy reference of the same forward pass (for validation)
# =============================================================================
def reference_forward(boxes, bh, bo, objects, prior, logits, targets):
    def sigmoid(x): return 1.0 / (1.0 + np.exp(-x))

    def box_iou(a, b):
        lt = np.maximum(a[:, None, :2], b[None, :, :2])
        rb = np.minimum(a[:, None, 2:], b[None, :, 2:])
        wh = np.clip(rb - lt, 0.0, None)
        inter = wh[..., 0] * wh[..., 1]
        area_a = (a[:, 2] - a[:, 0]) * (a[:, 3] - a[:, 1])
        area_b = (b[:, 2] - b[:, 0]) * (b[:, 3] - b[:, 1])
        union = area_a[:, None] + area_b[None, :] - inter
        return inter / union, union

    def giou(a, b):
        iou, union = box_iou(a, b)
        lt = np.minimum(a[:, None, :2], b[None, :, :2])
        rb = np.maximum(a[:, None, 2:], b[None, :, 2:])
        wh = np.clip(rb - lt, 0.0, None)
        area = wh[..., 0] * wh[..., 1]
        return iou - (area - union) / area

    bx_h = [boxes[i][bh[i]] for i in range(B)]
    bx_o = [boxes[i][bo[i]] for i in range(B)]
    Cs = []
    for i in range(B):
        lg = logits[i * M:(i + 1) * M]
        s = sigmoid(lg) * prior[i][0] * prior[i][1]
        l = targets[i]['labels']
        cv = -0.5 * (s @ l.T / (l.sum(1)[None, :] + EPS) +
                     (1 - s) @ (1 - l).T / ((1 - l).sum(1)[None, :] + EPS))
        cb = np.maximum(
            np.abs(bx_h[i][:, None, :] - targets[i]['boxes_h'][None]).sum(-1),
            np.abs(bx_o[i][:, None, :] - targets[i]['boxes_o'][None]).sum(-1))
        cg = np.maximum(
            -giou(cxcywh_to_xyxy_np(bx_h[i]), cxcywh_to_xyxy_np(targets[i]['boxes_h'])),
            -giou(cxcywh_to_xyxy_np(bx_o[i]), cxcywh_to_xyxy_np(targets[i]['boxes_o'])))
        eq = (objects[i][:, None] == targets[i]['object'][None, :]).astype(np.float32)
        co = -np.log(eq * prior[i][0].max(-1)[:, None] + EPS)
        Cs.append(cv + cb + cg + co)
    indices = [hungarian(c) for c in Cs]

    collated = []
    for i in range(B):
        ih, io = indices[i]
        iou_h = pairwise_iou_np(cxcywh_to_xyxy_np(bx_h[i][ih]),
                                cxcywh_to_xyxy_np(targets[i]['boxes_h'][io]))
        iou_o = pairwise_iou_np(cxcywh_to_xyxy_np(bx_o[i][ih]),
                                cxcywh_to_xyxy_np(targets[i]['boxes_o'][io]))
        mask = (np.minimum(iou_h, iou_o) > 0.5)[:, None]
        lab = np.zeros((M, K), np.float32)
        lab[ih] = targets[i]['labels'][io] * mask
        collated.append(lab)
    labels = np.concatenate(collated, 0)
    pr = np.concatenate([p[0] * p[1] for p in prior], 0)
    xs, ys = np.nonzero(pr)
    lg = logits[xs, ys]; p = pr[xs, ys]; y = labels[xs, ys]
    n_p = np.count_nonzero(y)
    x = np.log((p + 1e-8) / (1 + np.exp(-lg) - p))
    bce = np.maximum(x, 0.0) - x * y + np.log1p(np.exp(-np.abs(x)))
    loss = (np.abs(1 - y - ALPHA) * (np.abs(y - sigmoid(x)) + EPS) ** GAMMA * bce).sum()
    return loss / n_p


# =============================================================================
if __name__ == "__main__":
    key = jax.random.PRNGKey(0)
    boxes, bh_idx, bo_idx, objects, prior, targets = [], [], [], [], [], []
    for i in range(B):
        k = jax.random.fold_in(key, i)
        k1, k2, k3, k4, k5, k6, k7 = jax.random.split(k, 7)
        cxcy = jax.random.uniform(k1, (N_BOXES, 2), minval=0.3, maxval=0.7)
        wh = jax.random.uniform(k2, (N_BOXES, 2), minval=0.1, maxval=0.3)
        bxs = np.asarray(jnp.concatenate([cxcy, wh], axis=1), dtype=np.float32)
        boxes.append(bxs)
        bh_i = np.asarray(jax.random.randint(k3, (M,), 0, N_BOXES), dtype=np.int64)
        bo_i = np.asarray(jax.random.randint(k4, (M,), 0, N_BOXES), dtype=np.int64)
        bh_idx.append(bh_i); bo_idx.append(bo_i)
        obj_i = np.asarray(jax.random.randint(k5, (M,), 0, 16), dtype=np.int64)
        objects.append(obj_i)
        prior.append(np.asarray(jax.random.uniform(k6, (2, M, K),
                                                   minval=0.1, maxval=0.9),
                                dtype=np.float32))
        # GT box pairs copy the first G detected pairs -> guaranteed IoU > 0.5 matches
        lab = (np.asarray(jax.random.uniform(k7, (G, K))) < 0.2).astype(np.float32)
        lab[:, 0] = 1.0
        targets.append(dict(boxes_h=bxs[bh_i[:G]].copy(),
                            boxes_o=bxs[bo_i[:G]].copy(),
                            labels=lab,
                            object=obj_i[:G].copy()))
    logits = np.asarray(jax.random.normal(jax.random.fold_in(key, 100), (B * M, K)),
                        dtype=np.float32)
    bbox_deltas = np.asarray(jax.random.normal(jax.random.fold_in(key, 101),
                                               (B * M, 8)), dtype=np.float32)

    out = set_criterion_forward(boxes, bh_idx, bo_idx, objects, prior, logits,
                                bbox_deltas, targets)
    focal = jax.block_until_ready(out['focal_loss'])
    focal_v = float(np.asarray(focal))

    ref = reference_forward(boxes, bh_idx, bo_idx, objects, prior, logits, targets)
    assert np.isfinite(focal_v), "focal loss is not finite"
    assert np.allclose(focal_v, ref, rtol=2e-3, atol=2e-3), (focal_v, ref)
    print("KERNEL_OK")
</pallas_src>

<mosaic_0001>
module attributes {stable_mosaic.version = 11 : i64} {
  func.func @cost_matrix_kernel(%arg0: memref<68x32xf32, #tpu.memory_space<vmem>>, %arg1: memref<32x8xbf16, #tpu.memory_space<vmem>>, %arg2: memref<16x8xf32, #tpu.memory_space<vmem>>) attributes {dimension_semantics = [], scalar_prefetch = 0 : i64, scratch_operands = 0 : i64, tpu.core_type = #tpu.core_type<tc>} {
    %c0 = arith.constant 0 : index
    %c0_0 = arith.constant 0 : index
    %0 = vector.load %arg0[%c0, %c0_0] : memref<68x32xf32, #tpu.memory_space<vmem>>, vector<68x32xf32>
    %1 = vector.extract_strided_slice %0 {offsets = [0, 0], sizes = [16, 32], strides = [1, 1]} : vector<68x32xf32> to vector<16x32xf32>
    %2 = vector.extract_strided_slice %0 {offsets = [16, 0], sizes = [16, 32], strides = [1, 1]} : vector<68x32xf32> to vector<16x32xf32>
    %3 = vector.extract_strided_slice %0 {offsets = [32, 0], sizes = [16, 32], strides = [1, 1]} : vector<68x32xf32> to vector<16x32xf32>
    %4 = arith.negf %3 : vector<16x32xf32>
    %5 = math.exp %4 : vector<16x32xf32>
    %cst = arith.constant 1.000000e+00 : f32
    %6 = vector.broadcast %cst : f32 to vector<16x32xf32>
    %7 = arith.addf %6, %5 : vector<16x32xf32>
    %8 = arith.divf %6, %7 : vector<16x32xf32>
    %9 = arith.mulf %1, %2 : vector<16x32xf32>
    %10 = arith.mulf %8, %9 : vector<16x32xf32>
    %11 = arith.truncf %10 : vector<16x32xf32> to vector<16x32xbf16>
    %c0_1 = arith.constant 0 : index
    %c0_2 = arith.constant 0 : index
    %12 = vector.load %arg1[%c0_1, %c0_2] : memref<32x8xbf16, #tpu.memory_space<vmem>>, vector<32x8xbf16>
    %cst_3 = arith.constant dense<0.000000e+00> : vector<16x8xf32>
    %13 = tpu.matmul %11, %12, %cst_3 {dimension_numbers = #tpu.dot_dimension_numbers<[1], [0], [0], [1], [0, 0, 1, 1], [], []>} : vector<16x32xbf16>, vector<32x8xbf16>, vector<16x8xf32> -> vector<16x8xf32>
    %14 = vector.extract_strided_slice %0 {offsets = [48, 0], sizes = [16, 32], strides = [1, 1]} : vector<68x32xf32> to vector<16x32xf32>
    %15 = vector.extract_strided_slice %14 {offsets = [0, 0], sizes = [16, 4], strides = [1, 1]} : vector<16x32xf32> to vector<16x4xf32>
    %16 = vector.extract_strided_slice %14 {offsets = [0, 4], sizes = [16, 4], strides = [1, 1]} : vector<16x32xf32> to vector<16x4xf32>
    %17 = vector.extract_strided_slice %14 {offsets = [0, 8], sizes = [16, 8], strides = [1, 1]} : vector<16x32xf32> to vector<16x8xf32>
    %18 = vector.extract_strided_slice %0 {offsets = [64, 0], sizes = [4, 32], strides = [1, 1]} : vector<68x32xf32> to vector<4x32xf32>
    %19 = vector.extract_strided_slice %18 {offsets = [0, 0], sizes = [4, 8], strides = [1, 1]} : vector<4x32xf32> to vector<4x8xf32>
    %20 = vector.extract_strided_slice %18 {offsets = [0, 8], sizes = [4, 8], strides = [1, 1]} : vector<4x32xf32> to vector<4x8xf32>
    %21 = vector.extract_strided_slice %15 {offsets = [0, 0], sizes = [16, 1], strides = [1, 1]} : vector<16x4xf32> to vector<16x1xf32>
    %22 = vector.extract_strided_slice %19 {offsets = [0, 0], sizes = [1, 8], strides = [1, 1]} : vector<4x8xf32> to vector<1x8xf32>
    %23 = vector.broadcast %21 : vector<16x1xf32> to vector<16x8xf32>
    %24 = vector.broadcast %22 : vector<1x8xf32> to vector<16x8xf32>
    %25 = arith.subf %23, %24 : vector<16x8xf32>
    %26 = math.absf %25 : vector<16x8xf32>
    %27 = vector.extract_strided_slice %15 {offsets = [0, 1], sizes = [16, 1], strides = [1, 1]} : vector<16x4xf32> to vector<16x1xf32>
    %28 = vector.extract_strided_slice %19 {offsets = [1, 0], sizes = [1, 8], strides = [1, 1]} : vector<4x8xf32> to vector<1x8xf32>
    %29 = vector.broadcast %27 : vector<16x1xf32> to vector<16x8xf32>
    %30 = vector.broadcast %28 : vector<1x8xf32> to vector<16x8xf32>
    %31 = arith.subf %29, %30 : vector<16x8xf32>
    %32 = math.absf %31 : vector<16x8xf32>
    %33 = arith.addf %26, %32 : vector<16x8xf32>
    %34 = vector.extract_strided_slice %15 {offsets = [0, 2], sizes = [16, 1], strides = [1, 1]} : vector<16x4xf32> to vector<16x1xf32>
    %35 = vector.extract_strided_slice %19 {offsets = [2, 0], sizes = [1, 8], strides = [1, 1]} : vector<4x8xf32> to vector<1x8xf32>
    %36 = vector.broadcast %34 : vector<16x1xf32> to vector<16x8xf32>
    %37 = vector.broadcast %35 : vector<1x8xf32> to vector<16x8xf32>
    %38 = arith.subf %36, %37 : vector<16x8xf32>
    %39 = math.absf %38 : vector<16x8xf32>
    %40 = arith.addf %33, %39 : vector<16x8xf32>
    %41 = vector.extract_strided_slice %15 {offsets = [0, 3], sizes = [16, 1], strides = [1, 1]} : vector<16x4xf32> to vector<16x1xf32>
    %42 = vector.extract_strided_slice %19 {offsets = [3, 0], sizes = [1, 8], strides = [1, 1]} : vector<4x8xf32> to vector<1x8xf32>
    %43 = vector.broadcast %41 : vector<16x1xf32> to vector<16x8xf32>
    %44 = vector.broadcast %42 : vector<1x8xf32> to vector<16x8xf32>
    %45 = arith.subf %43, %44 : vector<16x8xf32>
    %46 = math.absf %45 : vector<16x8xf32>
    %47 = arith.addf %40, %46 : vector<16x8xf32>
    %48 = vector.extract_strided_slice %16 {offsets = [0, 0], sizes = [16, 1], strides = [1, 1]} : vector<16x4xf32> to vector<16x1xf32>
    %49 = vector.extract_strided_slice %20 {offsets = [0, 0], sizes = [1, 8], strides = [1, 1]} : vector<4x8xf32> to vector<1x8xf32>
    %50 = vector.broadcast %48 : vector<16x1xf32> to vector<16x8xf32>
    %51 = vector.broadcast %49 : vector<1x8xf32> to vector<16x8xf32>
    %52 = arith.subf %50, %51 : vector<16x8xf32>
    %53 = math.absf %52 : vector<16x8xf32>
    %54 = vector.extract_strided_slice %16 {offsets = [0, 1], sizes = [16, 1], strides = [1, 1]} : vector<16x4xf32> to vector<16x1xf32>
    %55 = vector.extract_strided_slice %20 {offsets = [1, 0], sizes = [1, 8], strides = [1, 1]} : vector<4x8xf32> to vector<1x8xf32>
    %56 = vector.broadcast %54 : vector<16x1xf32> to vector<16x8xf32>
    %57 = vector.broadcast %55 : vector<1x8xf32> to vector<16x8xf32>
    %58 = arith.subf %56, %57 : vector<16x8xf32>
    %59 = math.absf %58 : vector<16x8xf32>
    %60 = arith.addf %53, %59 : vector<16x8xf32>
    %61 = vector.extract_strided_slice %16 {offsets = [0, 2], sizes = [16, 1], strides = [1, 1]} : vector<16x4xf32> to vector<16x1xf32>
    %62 = vector.extract_strided_slice %20 {offsets = [2, 0], sizes = [1, 8], strides = [1, 1]} : vector<4x8xf32> to vector<1x8xf32>
    %63 = vector.broadcast %61 : vector<16x1xf32> to vector<16x8xf32>
    %64 = vector.broadcast %62 : vector<1x8xf32> to vector<16x8xf32>
    %65 = arith.subf %63, %64 : vector<16x8xf32>
    %66 = math.absf %65 : vector<16x8xf32>
    %67 = arith.addf %60, %66 : vector<16x8xf32>
    %68 = vector.extract_strided_slice %16 {offsets = [0, 3], sizes = [16, 1], strides = [1, 1]} : vector<16x4xf32> to vector<16x1xf32>
    %69 = vector.extract_strided_slice %20 {offsets = [3, 0], sizes = [1, 8], strides = [1, 1]} : vector<4x8xf32> to vector<1x8xf32>
    %70 = vector.broadcast %68 : vector<16x1xf32> to vector<16x8xf32>
    %71 = vector.broadcast %69 : vector<1x8xf32> to vector<16x8xf32>
    %72 = arith.subf %70, %71 : vector<16x8xf32>
    %73 = math.absf %72 : vector<16x8xf32>
    %74 = arith.addf %67, %73 : vector<16x8xf32>
    %75 = arith.maximumf %47, %74 : vector<16x8xf32>
    %76 = vector.extract_strided_slice %15 {offsets = [0, 0], sizes = [16, 1], strides = [1, 1]} : vector<16x4xf32> to vector<16x1xf32>
    %77 = vector.extract_strided_slice %15 {offsets = [0, 2], sizes = [16, 1], strides = [1, 1]} : vector<16x4xf32> to vector<16x1xf32>
    %cst_4 = arith.constant 5.000000e-01 : f32
    %78 = vector.broadcast %cst_4 : f32 to vector<16x1xf32>
    %79 = arith.mulf %78, %77 : vector<16x1xf32>
    %80 = arith.subf %76, %79 : vector<16x1xf32>
    %81 = vector.extract_strided_slice %15 {offsets = [0, 1], sizes = [16, 1], strides = [1, 1]} : vector<16x4xf32> to vector<16x1xf32>
    %82 = vector.extract_strided_slice %15 {offsets = [0, 3], sizes = [16, 1], strides = [1, 1]} : vector<16x4xf32> to vector<16x1xf32>
    %cst_5 = arith.constant 5.000000e-01 : f32
    %83 = vector.broadcast %cst_5 : f32 to vector<16x1xf32>
    %84 = arith.mulf %83, %82 : vector<16x1xf32>
    %85 = arith.subf %81, %84 : vector<16x1xf32>
    %86 = vector.extract_strided_slice %15 {offsets = [0, 0], sizes = [16, 1], strides = [1, 1]} : vector<16x4xf32> to vector<16x1xf32>
    %87 = vector.extract_strided_slice %15 {offsets = [0, 2], sizes = [16, 1], strides = [1, 1]} : vector<16x4xf32> to vector<16x1xf32>
    %cst_6 = arith.constant 5.000000e-01 : f32
    %88 = vector.broadcast %cst_6 : f32 to vector<16x1xf32>
    %89 = arith.mulf %88, %87 : vector<16x1xf32>
    %90 = arith.addf %86, %89 : vector<16x1xf32>
    %91 = vector.extract_strided_slice %15 {offsets = [0, 1], sizes = [16, 1], strides = [1, 1]} : vector<16x4xf32> to vector<16x1xf32>
    %92 = vector.extract_strided_slice %15 {offsets = [0, 3], sizes = [16, 1], strides = [1, 1]} : vector<16x4xf32> to vector<16x1xf32>
    %cst_7 = arith.constant 5.000000e-01 : f32
    %93 = vector.broadcast %cst_7 : f32 to vector<16x1xf32>
    %94 = arith.mulf %93, %92 : vector<16x1xf32>
    %95 = arith.addf %91, %94 : vector<16x1xf32>
    %96 = vector.extract_strided_slice %19 {offsets = [0, 0], sizes = [1, 8], strides = [1, 1]} : vector<4x8xf32> to vector<1x8xf32>
    %97 = vector.extract_strided_slice %19 {offsets = [2, 0], sizes = [1, 8], strides = [1, 1]} : vector<4x8xf32> to vector<1x8xf32>
    %cst_8 = arith.constant 5.000000e-01 : f32
    %98 = vector.broadcast %cst_8 : f32 to vector<1x8xf32>
    %99 = arith.mulf %98, %97 : vector<1x8xf32>
    %100 = arith.subf %96, %99 : vector<1x8xf32>
    %101 = vector.extract_strided_slice %19 {offsets = [1, 0], sizes = [1, 8], strides = [1, 1]} : vector<4x8xf32> to vector<1x8xf32>
    %102 = vector.extract_strided_slice %19 {offsets = [3, 0], sizes = [1, 8], strides = [1, 1]} : vector<4x8xf32> to vector<1x8xf32>
    %cst_9 = arith.constant 5.000000e-01 : f32
    %103 = vector.broadcast %cst_9 : f32 to vector<1x8xf32>
    %104 = arith.mulf %103, %102 : vector<1x8xf32>
    %105 = arith.subf %101, %104 : vector<1x8xf32>
    %106 = vector.extract_strided_slice %19 {offsets = [0, 0], sizes = [1, 8], strides = [1, 1]} : vector<4x8xf32> to vector<1x8xf32>
    %107 = vector.extract_strided_slice %19 {offsets = [2, 0], sizes = [1, 8], strides = [1, 1]} : vector<4x8xf32> to vector<1x8xf32>
    %cst_10 = arith.constant 5.000000e-01 : f32
    %108 = vector.broadcast %cst_10 : f32 to vector<1x8xf32>
    %109 = arith.mulf %108, %107 : vector<1x8xf32>
    %110 = arith.addf %106, %109 : vector<1x8xf32>
    %111 = vector.extract_strided_slice %19 {offsets = [1, 0], sizes = [1, 8], strides = [1, 1]} : vector<4x8xf32> to vector<1x8xf32>
    %112 = vector.extract_strided_slice %19 {offsets = [3, 0], sizes = [1, 8], strides = [1, 1]} : vector<4x8xf32> to vector<1x8xf32>
    %cst_11 = arith.constant 5.000000e-01 : f32
    %113 = vector.broadcast %cst_11 : f32 to vector<1x8xf32>
    %114 = arith.mulf %113, %112 : vector<1x8xf32>
    %115 = arith.addf %111, %114 : vector<1x8xf32>
    %116 = arith.subf %90, %80 : vector<16x1xf32>
    %117 = arith.subf %95, %85 : vector<16x1xf32>
    %118 = arith.mulf %116, %117 : vector<16x1xf32>
    %119 = arith.subf %110, %100 : vector<1x8xf32>
    %120 = arith.subf %115, %105 : vector<1x8xf32>
    %121 = arith.mulf %119, %120 : vector<1x8xf32>
    %122 = vector.broadcast %90 : vector<16x1xf32> to vector<16x8xf32>
    %123 = vector.broadcast %110 : vector<1x8xf32> to vector<16x8xf32>
    %124 = arith.minimumf %122, %123 : vector<16x8xf32>
    %125 = vector.broadcast %80 : vector<16x1xf32> to vector<16x8xf32>
    %126 = vector.broadcast %100 : vector<1x8xf32> to vector<16x8xf32>
    %127 = arith.maximumf %125, %126 : vector<16x8xf32>
    %128 = arith.subf %124, %127 : vector<16x8xf32>
    %cst_12 = arith.constant 0.000000e+00 : f32
    %129 = vector.broadcast %cst_12 : f32 to vector<16x8xf32>
    %130 = arith.maximumf %128, %129 : vector<16x8xf32>
    %131 = vector.broadcast %95 : vector<16x1xf32> to vector<16x8xf32>
    %132 = vector.broadcast %115 : vector<1x8xf32> to vector<16x8xf32>
    %133 = arith.minimumf %131, %132 : vector<16x8xf32>
    %134 = vector.broadcast %85 : vector<16x1xf32> to vector<16x8xf32>
    %135 = vector.broadcast %105 : vector<1x8xf32> to vector<16x8xf32>
    %136 = arith.maximumf %134, %135 : vector<16x8xf32>
    %137 = arith.subf %133, %136 : vector<16x8xf32>
    %cst_13 = arith.constant 0.000000e+00 : f32
    %138 = vector.broadcast %cst_13 : f32 to vector<16x8xf32>
    %139 = arith.maximumf %137, %138 : vector<16x8xf32>
    %140 = arith.mulf %130, %139 : vector<16x8xf32>
    %141 = vector.broadcast %118 : vector<16x1xf32> to vector<16x8xf32>
    %142 = vector.broadcast %121 : vector<1x8xf32> to vector<16x8xf32>
    %143 = arith.addf %141, %142 : vector<16x8xf32>
    %144 = arith.subf %143, %140 : vector<16x8xf32>
    %cst_14 = arith.constant 9.99999971E-10 : f32
    %145 = vector.broadcast %cst_14 : f32 to vector<16x8xf32>
    %146 = arith.addf %144, %145 : vector<16x8xf32>
    %147 = arith.divf %140, %146 : vector<16x8xf32>
    %148 = vector.broadcast %90 : vector<16x1xf32> to vector<16x8xf32>
    %149 = vector.broadcast %110 : vector<1x8xf32> to vector<16x8xf32>
    %150 = arith.maximumf %148, %149 : vector<16x8xf32>
    %151 = vector.broadcast %80 : vector<16x1xf32> to vector<16x8xf32>
    %152 = vector.broadcast %100 : vector<1x8xf32> to vector<16x8xf32>
    %153 = arith.minimumf %151, %152 : vector<16x8xf32>
    %154 = arith.subf %150, %153 : vector<16x8xf32>
    %155 = vector.broadcast %95 : vector<16x1xf32> to vector<16x8xf32>
    %156 = vector.broadcast %115 : vector<1x8xf32> to vector<16x8xf32>
    %157 = arith.maximumf %155, %156 : vector<16x8xf32>
    %158 = vector.broadcast %85 : vector<16x1xf32> to vector<16x8xf32>
    %159 = vector.broadcast %105 : vector<1x8xf32> to vector<16x8xf32>
    %160 = arith.minimumf %158, %159 : vector<16x8xf32>
    %161 = arith.subf %157, %160 : vector<16x8xf32>
    %162 = arith.mulf %154, %161 : vector<16x8xf32>
    %163 = arith.subf %162, %144 : vector<16x8xf32>
    %cst_15 = arith.constant 9.99999971E-10 : f32
    %164 = vector.broadcast %cst_15 : f32 to vector<16x8xf32>
    %165 = arith.addf %162, %164 : vector<16x8xf32>
    %166 = arith.divf %163, %165 : vector<16x8xf32>
    %167 = arith.subf %147, %166 : vector<16x8xf32>
    %cst_16 = arith.constant 0.000000e+00 : f32
    %168 = vector.broadcast %cst_16 : f32 to vector<16x8xf32>
    %169 = arith.subf %168, %167 : vector<16x8xf32>
    %170 = vector.extract_strided_slice %16 {offsets = [0, 0], sizes = [16, 1], strides = [1, 1]} : vector<16x4xf32> to vector<16x1xf32>
    %171 = vector.extract_strided_slice %16 {offsets = [0, 2], sizes = [16, 1], strides = [1, 1]} : vector<16x4xf32> to vector<16x1xf32>
    %cst_17 = arith.constant 5.000000e-01 : f32
    %172 = vector.broadcast %cst_17 : f32 to vector<16x1xf32>
    %173 = arith.mulf %172, %171 : vector<16x1xf32>
    %174 = arith.subf %170, %173 : vector<16x1xf32>
    %175 = vector.extract_strided_slice %16 {offsets = [0, 1], sizes = [16, 1], strides = [1, 1]} : vector<16x4xf32> to vector<16x1xf32>
    %176 = vector.extract_strided_slice %16 {offsets = [0, 3], sizes = [16, 1], strides = [1, 1]} : vector<16x4xf32> to vector<16x1xf32>
    %cst_18 = arith.constant 5.000000e-01 : f32
    %177 = vector.broadcast %cst_18 : f32 to vector<16x1xf32>
    %178 = arith.mulf %177, %176 : vector<16x1xf32>
    %179 = arith.subf %175, %178 : vector<16x1xf32>
    %180 = vector.extract_strided_slice %16 {offsets = [0, 0], sizes = [16, 1], strides = [1, 1]} : vector<16x4xf32> to vector<16x1xf32>
    %181 = vector.extract_strided_slice %16 {offsets = [0, 2], sizes = [16, 1], strides = [1, 1]} : vector<16x4xf32> to vector<16x1xf32>
    %cst_19 = arith.constant 5.000000e-01 : f32
    %182 = vector.broadcast %cst_19 : f32 to vector<16x1xf32>
    %183 = arith.mulf %182, %181 : vector<16x1xf32>
    %184 = arith.addf %180, %183 : vector<16x1xf32>
    %185 = vector.extract_strided_slice %16 {offsets = [0, 1], sizes = [16, 1], strides = [1, 1]} : vector<16x4xf32> to vector<16x1xf32>
    %186 = vector.extract_strided_slice %16 {offsets = [0, 3], sizes = [16, 1], strides = [1, 1]} : vector<16x4xf32> to vector<16x1xf32>
    %cst_20 = arith.constant 5.000000e-01 : f32
    %187 = vector.broadcast %cst_20 : f32 to vector<16x1xf32>
    %188 = arith.mulf %187, %186 : vector<16x1xf32>
    %189 = arith.addf %185, %188 : vector<16x1xf32>
    %190 = vector.extract_strided_slice %20 {offsets = [0, 0], sizes = [1, 8], strides = [1, 1]} : vector<4x8xf32> to vector<1x8xf32>
    %191 = vector.extract_strided_slice %20 {offsets = [2, 0], sizes = [1, 8], strides = [1, 1]} : vector<4x8xf32> to vector<1x8xf32>
    %cst_21 = arith.constant 5.000000e-01 : f32
    %192 = vector.broadcast %cst_21 : f32 to vector<1x8xf32>
    %193 = arith.mulf %192, %191 : vector<1x8xf32>
    %194 = arith.subf %190, %193 : vector<1x8xf32>
    %195 = vector.extract_strided_slice %20 {offsets = [1, 0], sizes = [1, 8], strides = [1, 1]} : vector<4x8xf32> to vector<1x8xf32>
    %196 = vector.extract_strided_slice %20 {offsets = [3, 0], sizes = [1, 8], strides = [1, 1]} : vector<4x8xf32> to vector<1x8xf32>
    %cst_22 = arith.constant 5.000000e-01 : f32
    %197 = vector.broadcast %cst_22 : f32 to vector<1x8xf32>
    %198 = arith.mulf %197, %196 : vector<1x8xf32>
    %199 = arith.subf %195, %198 : vector<1x8xf32>
    %200 = vector.extract_strided_slice %20 {offsets = [0, 0], sizes = [1, 8], strides = [1, 1]} : vector<4x8xf32> to vector<1x8xf32>
    %201 = vector.extract_strided_slice %20 {offsets = [2, 0], sizes = [1, 8], strides = [1, 1]} : vector<4x8xf32> to vector<1x8xf32>
    %cst_23 = arith.constant 5.000000e-01 : f32
    %202 = vector.broadcast %cst_23 : f32 to vector<1x8xf32>
    %203 = arith.mulf %202, %201 : vector<1x8xf32>
    %204 = arith.addf %200, %203 : vector<1x8xf32>
    %205 = vector.extract_strided_slice %20 {offsets = [1, 0], sizes = [1, 8], strides = [1, 1]} : vector<4x8xf32> to vector<1x8xf32>
    %206 = vector.extract_strided_slice %20 {offsets = [3, 0], sizes = [1, 8], strides = [1, 1]} : vector<4x8xf32> to vector<1x8xf32>
    %cst_24 = arith.constant 5.000000e-01 : f32
    %207 = vector.broadcast %cst_24 : f32 to vector<1x8xf32>
    %208 = arith.mulf %207, %206 : vector<1x8xf32>
    %209 = arith.addf %205, %208 : vector<1x8xf32>
    %210 = arith.subf %184, %174 : vector<16x1xf32>
    %211 = arith.subf %189, %179 : vector<16x1xf32>
    %212 = arith.mulf %210, %211 : vector<16x1xf32>
    %213 = arith.subf %204, %194 : vector<1x8xf32>
    %214 = arith.subf %209, %199 : vector<1x8xf32>
    %215 = arith.mulf %213, %214 : vector<1x8xf32>
    %216 = vector.broadcast %184 : vector<16x1xf32> to vector<16x8xf32>
    %217 = vector.broadcast %204 : vector<1x8xf32> to vector<16x8xf32>
    %218 = arith.minimumf %216, %217 : vector<16x8xf32>
    %219 = vector.broadcast %174 : vector<16x1xf32> to vector<16x8xf32>
    %220 = vector.broadcast %194 : vector<1x8xf32> to vector<16x8xf32>
    %221 = arith.maximumf %219, %220 : vector<16x8xf32>
    %222 = arith.subf %218, %221 : vector<16x8xf32>
    %cst_25 = arith.constant 0.000000e+00 : f32
    %223 = vector.broadcast %cst_25 : f32 to vector<16x8xf32>
    %224 = arith.maximumf %222, %223 : vector<16x8xf32>
    %225 = vector.broadcast %189 : vector<16x1xf32> to vector<16x8xf32>
    %226 = vector.broadcast %209 : vector<1x8xf32> to vector<16x8xf32>
    %227 = arith.minimumf %225, %226 : vector<16x8xf32>
    %228 = vector.broadcast %179 : vector<16x1xf32> to vector<16x8xf32>
    %229 = vector.broadcast %199 : vector<1x8xf32> to vector<16x8xf32>
    %230 = arith.maximumf %228, %229 : vector<16x8xf32>
    %231 = arith.subf %227, %230 : vector<16x8xf32>
    %cst_26 = arith.constant 0.000000e+00 : f32
    %232 = vector.broadcast %cst_26 : f32 to vector<16x8xf32>
    %233 = arith.maximumf %231, %232 : vector<16x8xf32>
    %234 = arith.mulf %224, %233 : vector<16x8xf32>
    %235 = vector.broadcast %212 : vector<16x1xf32> to vector<16x8xf32>
    %236 = vector.broadcast %215 : vector<1x8xf32> to vector<16x8xf32>
    %237 = arith.addf %235, %236 : vector<16x8xf32>
    %238 = arith.subf %237, %234 : vector<16x8xf32>
    %cst_27 = arith.constant 9.99999971E-10 : f32
    %239 = vector.broadcast %cst_27 : f32 to vector<16x8xf32>
    %240 = arith.addf %238, %239 : vector<16x8xf32>
    %241 = arith.divf %234, %240 : vector<16x8xf32>
    %242 = vector.broadcast %184 : vector<16x1xf32> to vector<16x8xf32>
    %243 = vector.broadcast %204 : vector<1x8xf32> to vector<16x8xf32>
    %244 = arith.maximumf %242, %243 : vector<16x8xf32>
    %245 = vector.broadcast %174 : vector<16x1xf32> to vector<16x8xf32>
    %246 = vector.broadcast %194 : vector<1x8xf32> to vector<16x8xf32>
    %247 = arith.minimumf %245, %246 : vector<16x8xf32>
    %248 = arith.subf %244, %247 : vector<16x8xf32>
    %249 = vector.broadcast %189 : vector<16x1xf32> to vector<16x8xf32>
    %250 = vector.broadcast %209 : vector<1x8xf32> to vector<16x8xf32>
    %251 = arith.maximumf %249, %250 : vector<16x8xf32>
    %252 = vector.broadcast %179 : vector<16x1xf32> to vector<16x8xf32>
    %253 = vector.broadcast %199 : vector<1x8xf32> to vector<16x8xf32>
    %254 = arith.minimumf %252, %253 : vector<16x8xf32>
    %255 = arith.subf %251, %254 : vector<16x8xf32>
    %256 = arith.mulf %248, %255 : vector<16x8xf32>
    %257 = arith.subf %256, %238 : vector<16x8xf32>
    %cst_28 = arith.constant 9.99999971E-10 : f32
    %258 = vector.broadcast %cst_28 : f32 to vector<16x8xf32>
    %259 = arith.addf %256, %258 : vector<16x8xf32>
    %260 = arith.divf %257, %259 : vector<16x8xf32>
    %261 = arith.subf %241, %260 : vector<16x8xf32>
    %cst_29 = arith.constant 0.000000e+00 : f32
    %262 = vector.broadcast %cst_29 : f32 to vector<16x8xf32>
    %263 = arith.subf %262, %261 : vector<16x8xf32>
    %264 = arith.maximumf %169, %263 : vector<16x8xf32>
    %cst_30 = arith.constant -5.000000e-01 : f32
    %265 = vector.broadcast %cst_30 : f32 to vector<16x8xf32>
    %266 = arith.mulf %265, %13 : vector<16x8xf32>
    %cst_31 = arith.constant 1.000000e+00 : f32
    %267 = vector.broadcast %cst_31 : f32 to vector<16x8xf32>
    %268 = arith.mulf %267, %75 : vector<16x8xf32>
    %269 = arith.addf %266, %268 : vector<16x8xf32>
    %cst_32 = arith.constant 1.000000e+00 : f32
    %270 = vector.broadcast %cst_32 : f32 to vector<16x8xf32>
    %271 = arith.mulf %270, %264 : vector<16x8xf32>
    %272 = arith.addf %269, %271 : vector<16x8xf32>
    %273 = arith.addf %272, %17 : vector<16x8xf32>
    %c0_33 = arith.constant 0 : index
    %c0_34 = arith.constant 0 : index
    %274 = vector.load %arg2[%c0_33, %c0_34] : memref<16x8xf32, #tpu.memory_space<vmem>>, vector<16x8xf32>
    tpu.vector_store %arg2[%c0_33, %c0_34], %273 {strides = array<i32>} : memref<16x8xf32, #tpu.memory_space<vmem>>, vector<16x8xf32>,
    return
  }
}

</mosaic_0001>

<llo_original>
// kernel: _cost_matrix_impl.1
$region0: #{_cost_matrix_impl.1}
  #allocation0 [shape = 'u32[]', space=smem, size = 0x4, offset = 0x4, fixed_abs, tag = 'smem constant byte address 0x4 - core index']
  #allocation1 [shape = 'u32[144,128]{1,0:T(1,128)}', space=vmem, size = 0x12000, scoped, tag = 'internal scratch']
  %s0 = inlined_call_operand.vmem [shape: f32[68,32], index: 0, kind: input, shape index: {}]
  %s1 = inlined_call_operand.vmem [shape: bf16[32,8], index: 1, kind: input, shape index: {}]
  %s2 = inlined_call_operand.vmem [shape: f32[16,8], index: 2, kind: output, shape index: {}]
  %s3 = sld [smem:[#allocation0]]
  $region18: #{_cost_matrix_impl.1} parent=0
    _
  %s5 = ssub.s32 1, %s3
  %s6 = scalar_select 0, %s5, %s3
  // Predicated region
  $region2: #{_cost_matrix_impl.1} parent=0 // pred_check
    _
  $region3: #{_cost_matrix_impl.1} parent=0 // pred_check_branch
    %8 = sbr.rel (0) target = $region5
  $region4: #{_cost_matrix_impl.1} parent=0 // pred_region
    _
  $region5: #{_cost_matrix_impl.1} parent=0 // pred_fallthru
    _
  // Predicated region
  $region6: #{_cost_matrix_impl.1} parent=0 // pred_check
    _
  $region7: #{_cost_matrix_impl.1} parent=0 // pred_check_branch
    %10 = sbr.rel (0) target = $region9
  $region8: #{_cost_matrix_impl.1} parent=0 // pred_region
    _
  $region9: #{_cost_matrix_impl.1} parent=0 // pred_fallthru
    _
  %v12 = vld [vmem:[%s0] sm:$0xff]
  %v13 = vld [vmem:[%s0 + $0x8] sm:$0xff]
  %v14 = vld [vmem:[%s0 + $0x10] sm:$0xff]
  %v15 = vld [vmem:[%s0 + $0x18] sm:$0xff]
  %v16 = vld [vmem:[%s0 + $0x20] sm:$0xff]
  %v17 = vld [vmem:[%s0 + $0x28] sm:$0xff]
  %v18 = vld [vmem:[%s0 + $0x30] sm:$0xff]
  %v19 = vld [vmem:[%s0 + $0x38] sm:$0xff]
  %v20 = vld [vmem:[%s0 + $0x40] sm:$0xf]
  %v21 = vxor.u32 %v16, 2147483648
  %v22 = vxor.u32 %v17, 2147483648
  %v23 = vmul.f32 %v21, 1.442695
  %v24 = vpow.pop %v23
  %v25 = vmul.f32 %v22, 1.442695
  %v26 = vpow.pop %v25
  %v27 = vadd.f32 %v24, 1.0
  %v28 = vadd.f32 %v26, 1.0
  %v29 = vrcp.pop %v27
  %v30 = vmul.f32 1.0, %v29
  %v31 = vrcp.pop %v28
  %v32 = vmul.f32 1.0, %v31
  %v33 = vmul.f32 %v12, %v14
  %v34 = vmul.f32 %v13, %v15
  %v35 = vmul.f32 %v30, %v33
  %v36 = vmul.f32 %v32, %v34
  %v37 = vpack.c.bf16 %v36, %v35
  %v38 = vld [vmem:[%s1] sm:$0xf]
  %v39 = vld [vmem:[%s1 + $0x4] sm:$0xf]
  %v40 = vld [vmem:[%s1 + $0x8] sm:$0xf]
  %v41 = vld [vmem:[%s1 + $0xc] sm:$0xf]
  %v46 = vunpack.c.l.b16 %v38
  %v47 = vunpack.c.l.b16 %v39
  %v48 = vunpack.c.l.b16 %v40
  %v49 = vunpack.c.l.b16 %v41
  %v50 = vpack.c.b16 %v47, %v46
  %v51 = vpack.c.b16 %v49, %v48
  %vm54 = vcmask 261120
  %v56 = vsel %vm54, %v37, 0
  %58 = vmatprep.subr.bf16.mxu0 0
  %59 = vmatpush1.bf16.msra.mxu0 0
  %60 = vmatprep.subr.bf16.mxu0 0
  %61 = vmatpush1.bf16.msra.mxu0 0
  %62 = vmatprep.subr.bf16.mxu0 0
  %63 = vmatpush1.bf16.msra.mxu0 0
  %64 = vmatprep.subr.bf16.mxu0 0
  %65 = vmatpush1.bf16.msra.mxu0 0
  %66 = vmatprep.subr.bf16.mxu0 0
  %67 = vmatpush1.bf16.msra.mxu0 0
  %68 = vmatprep.subr.bf16.mxu0 0
  %69 = vmatpush1.bf16.msra.mxu0 0
  %70 = vmatprep.subr.bf16.mxu0 0
  %71 = vmatpush1.bf16.msra.mxu0 %v51
  %72 = vmatprep.subr.bf16.mxu0 0
  %73 = vmatpush1.bf16.msra.mxu0 %v50
  %74 = vmatprep.subr.bf16.mxu0 0
  %75 = vmatpush2.bf16.msra.mxu0 0
  %76 = vmatprep.subr.bf16.mxu0 0
  %77 = vmatpush2.bf16.msra.mxu0 0
  %78 = vmatprep.subr.bf16.mxu0 0
  %79 = vmatpush2.bf16.msra.mxu0 0
  %80 = vmatprep.subr.bf16.mxu0 0
  %81 = vmatpush2.bf16.msra.mxu0 0
  %82 = vmatprep.subr.bf16.mxu0 0
  %83 = vmatpush2.bf16.msra.mxu0 0
  %84 = vmatprep.subr.bf16.mxu0 0
  %85 = vmatpush2.bf16.msra.mxu0 0
  %86 = vmatprep.subr.bf16.mxu0 0
  %87 = vmatpush2.bf16.msra.mxu0 0
  %88 = vmatprep.subr.bf16.mxu0 0
  %89 = vmatpush2.bf16.msra.mxu0 0
  %90 = vmatprep.mubr.bf16.mxu0 0
  %91 = vmatmul.mubr.bf16.gmra.mxu0 %v56
  %v92 = vpop.f32.mrf.mxu0
  %v93 = vadd.f32 0.0, %v92
  %v94 = vpop.f32.mrf.mxu0
  %v95 = vpop.f32.mrf.mxu0
  %v96 = vadd.f32 0.0, %v95
  %v97 = vpop.f32.mrf.mxu0
  %98 = vdwg.mxu0
  %100 = vset.pattern.permute.xlu0 0
  %101 = vperm.xlu0 %100, %v18
  %v102 = vpop.permute.xlu0 %101
  %105 = vset.pattern.permute.xlu0 0
  %106 = vperm.xlu0 %105, %v19
  %v107 = vpop.permute.xlu0 %106
  %v109 = vlaneseq
  %v110 = vshrl.u32 %v109, 7
  %v111 = vsub.s32 0, %v110
  %v112 = vrot.slane %v20, %v111
  %v113 = vsub.f32 %v102, %v112
  %v114 = vsub.f32 %v107, %v112
  %v115 = vand.u32 2147483647, %v113
  %v116 = vand.u32 2147483647, %v114
  %117 = vset.pattern.permute.xlu0 1
  %118 = vperm.xlu0 %117, %v18
  %v119 = vpop.permute.xlu0 %118
  %121 = vset.pattern.permute.xlu0 1
  %122 = vperm.xlu0 %121, %v19
  %v123 = vpop.permute.xlu0 %122
  %v125 = vlaneseq
  %v126 = vshrl.u32 %v125, 7
  %v127 = vsub.s32 1, %v126
  %v128 = vrot.slane %v20, %v127
  %v129 = vsub.f32 %v119, %v128
  %v130 = vsub.f32 %v123, %v128
  %v131 = vand.u32 2147483647, %v129
  %v132 = vand.u32 2147483647, %v130
  %v133 = vadd.f32 %v115, %v131
  %v134 = vadd.f32 %v116, %v132
  %135 = vset.pattern.permute.xlu0 2
  %136 = vperm.xlu0 %135, %v18
  %v137 = vpop.permute.xlu0 %136
  %139 = vset.pattern.permute.xlu0 2
  %140 = vperm.xlu0 %139, %v19
  %v141 = vpop.permute.xlu0 %140
  %v143 = vlaneseq
  %v144 = vshrl.u32 %v143, 7
  %v145 = vsub.s32 2, %v144
  %v146 = vrot.slane %v20, %v145
  %v147 = vsub.f32 %v137, %v146
  %v148 = vsub.f32 %v141, %v146
  %v149 = vand.u32 2147483647, %v147
  %v150 = vand.u32 2147483647, %v148
  %v151 = vadd.f32 %v133, %v149
  %v152 = vadd.f32 %v134, %v150
  %153 = vset.pattern.permute.xlu0 3
  %154 = vperm.xlu0 %153, %v18
  %v155 = vpop.permute.xlu0 %154
  %157 = vset.pattern.permute.xlu0 3
  %158 = vperm.xlu0 %157, %v19
  %v159 = vpop.permute.xlu0 %158
  %v161 = vlaneseq
  %v162 = vshrl.u32 %v161, 7
  %v163 = vsub.s32 3, %v162
  %v164 = vrot.slane %v20, %v163
  %v165 = vsub.f32 %v155, %v164
  %v166 = vsub.f32 %v159, %v164
  %v167 = vand.u32 2147483647, %v165
  %v168 = vand.u32 2147483647, %v166
  %v169 = vadd.f32 %v151, %v167
  %v170 = vadd.f32 %v152, %v168
  %171 = vset.pattern.permute.xlu0 4
  %172 = vperm.xlu0 %171, %v18
  %v173 = vpop.permute.xlu0 %172
  %175 = vset.pattern.permute.xlu0 4
  %176 = vperm.xlu0 %175, %v19
  %v177 = vpop.permute.xlu0 %176
  %v179 = vsub.f32 %v173, %v112
  %v180 = vsub.f32 %v177, %v112
  %v181 = vand.u32 2147483647, %v179
  %v182 = vand.u32 2147483647, %v180
  %183 = vset.pattern.permute.xlu0 5
  %184 = vperm.xlu0 %183, %v18
  %v185 = vpop.permute.xlu0 %184
  %187 = vset.pattern.permute.xlu0 5
  %188 = vperm.xlu0 %187, %v19
  %v189 = vpop.permute.xlu0 %188
  %v191 = vsub.f32 %v185, %v128
  %v192 = vsub.f32 %v189, %v128
  %v193 = vand.u32 2147483647, %v191
  %v194 = vand.u32 2147483647, %v192
  %v195 = vadd.f32 %v181, %v193
  %v196 = vadd.f32 %v182, %v194
  %197 = vset.pattern.permute.xlu0 6
  %198 = vperm.xlu0 %197, %v18
  %v199 = vpop.permute.xlu0 %198
  %201 = vset.pattern.permute.xlu0 6
  %202 = vperm.xlu0 %201, %v19
  %v203 = vpop.permute.xlu0 %202
  %v205 = vsub.f32 %v199, %v146
  %v206 = vsub.f32 %v203, %v146
  %v207 = vand.u32 2147483647, %v205
  %v208 = vand.u32 2147483647, %v206
  %v209 = vadd.f32 %v195, %v207
  %v210 = vadd.f32 %v196, %v208
  %211 = vset.pattern.permute.xlu0 7
  %212 = vperm.xlu0 %211, %v18
  %v213 = vpop.permute.xlu0 %212
  %215 = vset.pattern.permute.xlu0 7
  %216 = vperm.xlu0 %215, %v19
  %v217 = vpop.permute.xlu0 %216
  %v219 = vsub.f32 %v213, %v164
  %v220 = vsub.f32 %v217, %v164
  %v221 = vand.u32 2147483647, %v219
  %v222 = vand.u32 2147483647, %v220
  %v223 = vadd.f32 %v209, %v221
  %v224 = vadd.f32 %v210, %v222
  %227 = vrot.lane.b32.xlu0 %v223, 120
  %v228 = vpop.permute.xlu0 %227
  %229 = vrot.lane.b32.xlu0 %v224, 120
  %v230 = vpop.permute.xlu0 %229
  %v233 = vmax.f32 %v169, %v228
  %v234 = vmax.f32 %v170, %v230
  %v235 = vmul.f32 %v18, 0.5
  %v236 = vmul.f32 %v19, 0.5
  %239 = vrot.lane.b32.xlu0 %v235, 126
  %v240 = vpop.permute.xlu0 %239
  %241 = vrot.lane.b32.xlu0 %v236, 126
  %v242 = vpop.permute.xlu0 %241
  %v245 = vsub.f32 %v18, %v240
  %v246 = vsub.f32 %v19, %v242
  %v247 = vadd.f32 %v18, %v240
  %v248 = vadd.f32 %v19, %v242
  %v249 = vmul.f32 %v20, 0.5
  %v251 = vrot.slane %v249, 2
  %v253 = vsub.f32 %v20, %v251
  %v254 = vadd.f32 %v20, %v251
  %v255 = vsub.f32 %v247, %v245
  %v256 = vsub.f32 %v248, %v246
  %259 = vrot.lane.b32.xlu0 %v255, 127
  %v260 = vpop.permute.xlu0 %259
  %261 = vrot.lane.b32.xlu0 %v256, 127
  %v262 = vpop.permute.xlu0 %261
  %v265 = vmul.f32 %v255, %v260
  %v266 = vmul.f32 %v256, %v262
  %v267 = vsub.f32 %v254, %v253
  %v269 = vrot.slane %v267, 1
  %v271 = vmul.f32 %v267, %v269
  %273 = vset.pattern.permute.xlu0 0
  %274 = vperm.xlu0 %273, %v247
  %v275 = vpop.permute.xlu0 %274
  %278 = vset.pattern.permute.xlu0 0
  %279 = vperm.xlu0 %278, %v248
  %v280 = vpop.permute.xlu0 %279
  %v282 = vlaneseq
  %v283 = vshrl.u32 %v282, 7
  %v284 = vsub.s32 0, %v283
  %v285 = vrot.slane %v254, %v284
  %v286 = vmin.f32 %v275, %v285
  %v287 = vmin.f32 %v280, %v285
  %289 = vset.pattern.permute.xlu0 0
  %290 = vperm.xlu0 %289, %v245
  %v291 = vpop.permute.xlu0 %290
  %294 = vset.pattern.permute.xlu0 0
  %295 = vperm.xlu0 %294, %v246
  %v296 = vpop.permute.xlu0 %295
  %v298 = vlaneseq
  %v299 = vshrl.u32 %v298, 7
  %v300 = vsub.s32 0, %v299
  %v301 = vrot.slane %v253, %v300
  %v302 = vmax.f32 %v291, %v301
  %v303 = vmax.f32 %v296, %v301
  %v304 = vsub.f32 %v286, %v302
  %v305 = vsub.f32 %v287, %v303
  %v306 = vmax.f32 %v304, 0.0
  %v307 = vmax.f32 %v305, 0.0
  %308 = vset.pattern.permute.xlu0 1
  %309 = vperm.xlu0 %308, %v247
  %v310 = vpop.permute.xlu0 %309
  %312 = vset.pattern.permute.xlu0 1
  %313 = vperm.xlu0 %312, %v248
  %v314 = vpop.permute.xlu0 %313
  %v316 = vlaneseq
  %v317 = vshrl.u32 %v316, 7
  %v318 = vsub.s32 1, %v317
  %v319 = vrot.slane %v254, %v318
  %v320 = vmin.f32 %v310, %v319
  %v321 = vmin.f32 %v314, %v319
  %322 = vset.pattern.permute.xlu0 1
  %323 = vperm.xlu0 %322, %v245
  %v324 = vpop.permute.xlu0 %323
  %326 = vset.pattern.permute.xlu0 1
  %327 = vperm.xlu0 %326, %v246
  %v328 = vpop.permute.xlu0 %327
  %v330 = vlaneseq
  %v331 = vshrl.u32 %v330, 7
  %v332 = vsub.s32 1, %v331
  %v333 = vrot.slane %v253, %v332
  %v334 = vmax.f32 %v324, %v333
  %v335 = vmax.f32 %v328, %v333
  %v336 = vsub.f32 %v320, %v334
  %v337 = vsub.f32 %v321, %v335
  %v338 = vmax.f32 %v336, 0.0
  %v339 = vmax.f32 %v337, 0.0
  %v340 = vmul.f32 %v306, %v338
  %v341 = vmul.f32 %v307, %v339
  %343 = vset.pattern.permute.xlu0 0
  %344 = vperm.xlu0 %343, %v265
  %v345 = vpop.permute.xlu0 %344
  %348 = vset.pattern.permute.xlu0 0
  %349 = vperm.xlu0 %348, %v266
  %v350 = vpop.permute.xlu0 %349
  %v352 = vlaneseq
  %v353 = vshrl.u32 %v352, 7
  %v354 = vsub.s32 0, %v353
  %v355 = vrot.slane %v271, %v354
  %v356 = vadd.f32 %v345, %v355
  %v357 = vadd.f32 %v350, %v355
  %v358 = vsub.f32 %v356, %v340
  %v359 = vsub.f32 %v357, %v341
  %v360 = vadd.f32 %v358, 1e-09
  %v361 = vadd.f32 %v359, 1e-09
  %v362 = vrcp.pop %v360
  %v363 = vmul.f32 %v340, %v362
  %v364 = vrcp.pop %v361
  %v365 = vmul.f32 %v341, %v364
  %v366 = vmax.f32 %v275, %v285
  %v367 = vmax.f32 %v280, %v285
  %v368 = vmin.f32 %v291, %v301
  %v369 = vmin.f32 %v296, %v301
  %v370 = vsub.f32 %v366, %v368
  %v371 = vsub.f32 %v367, %v369
  %v372 = vmax.f32 %v310, %v319
  %v373 = vmax.f32 %v314, %v319
  %v374 = vmin.f32 %v324, %v333
  %v375 = vmin.f32 %v328, %v333
  %v376 = vsub.f32 %v372, %v374
  %v377 = vsub.f32 %v373, %v375
  %v378 = vmul.f32 %v370, %v376
  %v379 = vmul.f32 %v371, %v377
  %v380 = vsub.f32 %v378, %v358
  %v381 = vsub.f32 %v379, %v359
  %v382 = vadd.f32 %v378, 1e-09
  %v383 = vadd.f32 %v379, 1e-09
  %v384 = vrcp.pop %v382
  %v385 = vmul.f32 %v380, %v384
  %v386 = vrcp.pop %v383
  %v387 = vmul.f32 %v381, %v386
  %v388 = vsub.f32 %v363, %v385
  %v389 = vsub.f32 %v365, %v387
  %v390 = vsub.f32 0.0, %v388
  %v391 = vsub.f32 0.0, %v389
  %392 = vset.pattern.permute.xlu0 4
  %393 = vperm.xlu0 %392, %v247
  %v394 = vpop.permute.xlu0 %393
  %396 = vset.pattern.permute.xlu0 4
  %397 = vperm.xlu0 %396, %v248
  %v398 = vpop.permute.xlu0 %397
  %v400 = vmin.f32 %v394, %v285
  %v401 = vmin.f32 %v398, %v285
  %402 = vset.pattern.permute.xlu0 4
  %403 = vperm.xlu0 %402, %v245
  %v404 = vpop.permute.xlu0 %403
  %406 = vset.pattern.permute.xlu0 4
  %407 = vperm.xlu0 %406, %v246
  %v408 = vpop.permute.xlu0 %407
  %v410 = vmax.f32 %v404, %v301
  %v411 = vmax.f32 %v408, %v301
  %v412 = vsub.f32 %v400, %v410
  %v413 = vsub.f32 %v401, %v411
  %v414 = vmax.f32 %v412, 0.0
  %v415 = vmax.f32 %v413, 0.0
  %416 = vset.pattern.permute.xlu0 5
  %417 = vperm.xlu0 %416, %v247
  %v418 = vpop.permute.xlu0 %417
  %420 = vset.pattern.permute.xlu0 5
  %421 = vperm.xlu0 %420, %v248
  %v422 = vpop.permute.xlu0 %421
  %v424 = vmin.f32 %v418, %v319
  %v425 = vmin.f32 %v422, %v319
  %426 = vset.pattern.permute.xlu0 5
  %427 = vperm.xlu0 %426, %v245
  %v428 = vpop.permute.xlu0 %427
  %430 = vset.pattern.permute.xlu0 5
  %431 = vperm.xlu0 %430, %v246
  %v432 = vpop.permute.xlu0 %431
  %v434 = vmax.f32 %v428, %v333
  %v435 = vmax.f32 %v432, %v333
  %v436 = vsub.f32 %v424, %v434
  %v437 = vsub.f32 %v425, %v435
  %v438 = vmax.f32 %v436, 0.0
  %v439 = vmax.f32 %v437, 0.0
  %v440 = vmul.f32 %v414, %v438
  %v441 = vmul.f32 %v415, %v439
  %442 = vset.pattern.permute.xlu0 4
  %443 = vperm.xlu0 %442, %v265
  %v444 = vpop.permute.xlu0 %443
  %446 = vset.pattern.permute.xlu0 4
  %447 = vperm.xlu0 %446, %v266
  %v448 = vpop.permute.xlu0 %447
  %v450 = vadd.f32 %v444, %v355
  %v451 = vadd.f32 %v448, %v355
  %v452 = vsub.f32 %v450, %v440
  %v453 = vsub.f32 %v451, %v441
  %v454 = vadd.f32 %v452, 1e-09
  %v455 = vadd.f32 %v453, 1e-09
  %v456 = vrcp.pop %v454
  %v457 = vmul.f32 %v440, %v456
  %v458 = vrcp.pop %v455
  %v459 = vmul.f32 %v441, %v458
  %v460 = vmax.f32 %v394, %v285
  %v461 = vmax.f32 %v398, %v285
  %v462 = vmin.f32 %v404, %v301
  %v463 = vmin.f32 %v408, %v301
  %v464 = vsub.f32 %v460, %v462
  %v465 = vsub.f32 %v461, %v463
  %v466 = vmax.f32 %v418, %v319
  %v467 = vmax.f32 %v422, %v319
  %v468 = vmin.f32 %v428, %v333
  %v469 = vmin.f32 %v432, %v333
  %v470 = vsub.f32 %v466, %v468
  %v471 = vsub.f32 %v467, %v469
  %v472 = vmul.f32 %v464, %v470
  %v473 = vmul.f32 %v465, %v471
  %v474 = vsub.f32 %v472, %v452
  %v475 = vsub.f32 %v473, %v453
  %v476 = vadd.f32 %v472, 1e-09
  %v477 = vadd.f32 %v473, 1e-09
  %v478 = vrcp.pop %v476
  %v479 = vmul.f32 %v474, %v478
  %v480 = vrcp.pop %v477
  %v481 = vmul.f32 %v475, %v480
  %v482 = vsub.f32 %v457, %v479
  %v483 = vsub.f32 %v459, %v481
  %v484 = vsub.f32 0.0, %v482
  %v485 = vsub.f32 0.0, %v483
  %488 = vrot.lane.b32.xlu0 %v484, 120
  %v489 = vpop.permute.xlu0 %488
  %490 = vrot.lane.b32.xlu0 %v485, 120
  %v491 = vpop.permute.xlu0 %490
  %v494 = vmax.f32 %v390, %v489
  %v495 = vmax.f32 %v391, %v491
  %v496 = vmul.f32 %v93, -0.5
  %v497 = vmul.f32 %v96, -0.5
  %v498 = vadd.f32 %v496, %v233
  %v499 = vadd.f32 %v497, %v234
  %v500 = vadd.f32 %v498, %v494
  %v501 = vadd.f32 %v499, %v495
  %502 = vrot.lane.b32.xlu0 %v18, 120
  %v503 = vpop.permute.xlu0 %502
  %504 = vrot.lane.b32.xlu0 %v19, 120
  %v505 = vpop.permute.xlu0 %504
  %v508 = vadd.f32 %v500, %v503
  %v509 = vadd.f32 %v501, %v505
  %vm510 = vcmask 64512
  %511 = vst.msk [vmem:[%s2] sm:$0xff] %vm510, %v508
  %512 = vst.msk [vmem:[%s2 + $0x8] sm:$0xff] %vm510, %v509
  // Predicated region
  $region10: #{_cost_matrix_impl.1} parent=0 // pred_check
    _
  $region11: #{_cost_matrix_impl.1} parent=0 // pred_check_branch
    %514 = sbr.rel (0) target = $region13
  $region12: #{_cost_matrix_impl.1} parent=0 // pred_region
    _
  $region13: #{_cost_matrix_impl.1} parent=0 // pred_fallthru
    _
  // Predicated region
  $region14: #{_cost_matrix_impl.1} parent=0 // pred_check
    _
  $region15: #{_cost_matrix_impl.1} parent=0 // pred_check_branch
    %516 = sbr.rel (0) target = $region17
  $region16: #{_cost_matrix_impl.1} parent=0 // pred_region
    _
  $region17: #{_cost_matrix_impl.1} parent=0 // pred_fallthru
    _

</llo_original>
